<compile_context>
chip_gen: v7x
topology: tpu7x:2x2x1
jax: 0.10.0
libtpu: 0.0.40
codegen_flags: <defaults>
</compile_context>

<pallas_src>
import functools

import jax
import jax.numpy as jnp
from jax.experimental import pallas as pl
from jax.experimental.pallas import tpu as pltpu

_LANE = 128  # vreg lane width


def _round_up(n: int, m: int) -> int:
    return ((n + m - 1) // m) * m


def _fused_mlp_kernel(*refs, num_layers: int):
    # refs = (xT_ref, w0, b0, w1, b1, ..., w_{L-1}, b_{L-1}, oT_ref)
    # Layout: activations are [features, batch] (batch on the lane axis).
    x_ref = refs[0]
    o_ref = refs[-1]
    param_refs = refs[1:-1]

    h = x_ref[...]
    for i in range(num_layers):
        w = param_refs[2 * i][...]            # [dout_i, din_i]  (nn.Linear layout)
        b = param_refs[2 * i + 1][...]        # [dout_i, 1], broadcast over lanes
        h = jnp.dot(w, h.astype(w.dtype), preferred_element_type=jnp.float32) + b
        if i != num_layers - 1:
            h = jnp.maximum(h, 0.0)           # fused ReLU (not on the last layer)
        # nn.Dropout is identity in inference mode -> no-op here.
    o_ref[...] = h.astype(o_ref.dtype)


def mlp_forward(x, params, *, block_batch: int = 4096,
                cast_inputs_to_bf16: bool = False):
    """Full MLP forward as a single fused Pallas call.

    x: [batch, input_dim]
    params: list of (w, b) with w shaped [out, in] (PyTorch nn.Linear layout)
            and b shaped [out].
    Returns: [batch, output_dim] float32.
    """
    batch, din = x.shape
    num_layers = len(params)
    dout = params[-1][0].shape[0]

    in_dtype = jnp.bfloat16 if cast_inputs_to_bf16 else x.dtype
    x_t = jnp.transpose(x).astype(in_dtype)          # [din, batch], batch on lanes

    flat_params = []
    for w, b in params:
        flat_params.append(w.astype(in_dtype))                   # [out, in]
        flat_params.append(b.reshape(-1, 1).astype(jnp.float32))  # [out, 1]

    kernel = functools.partial(_fused_mlp_kernel, num_layers=num_layers)
    out_dtype = jnp.float32  # match the reference's f32 accumulation

    if batch <= _LANE:
        # Tiny problem: one grid-less, fully-resident VMEM block (a few KiB).
        out_t = pl.pallas_call(
            kernel,
            out_shape=jax.ShapeDtypeStruct((dout, batch), out_dtype),
            in_specs=[pl.BlockSpec(memory_space=pltpu.MemorySpace.VMEM)]
            * (1 + len(flat_params)),
            out_specs=pl.BlockSpec(memory_space=pltpu.MemorySpace.VMEM),
        )(x_t, *flat_params)
        return jnp.transpose(out_t)

    # Batch-tiled, lane-dense path.
    #  * TB is a multiple of 128 (lane width) so x/out blocks are unmasked.
    #  * TB is large (default 4096 -> 512 KiB x-tile in f32) to amortize the
    #    ~0.35us/step grid overhead, but capped so grid >= 2 ("parallel" axis
    #    then shards across v7x's two TensorCores).
    #  * Non-divisible batches are zero-padded; result sliced back afterwards.
    bb = max(_LANE, (block_batch // _LANE) * _LANE)
    tb = max(_LANE, min(bb, _round_up(pl.cdiv(batch, 2), _LANE)))
    padded = _round_up(batch, tb)
    if padded != batch:
        x_t = jnp.pad(x_t, ((0, 0), (0, padded - batch)))
    grid = (padded // tb,)

    in_specs = [pl.BlockSpec((din, tb), lambda i: (0, i))]
    for w2d, b2d in zip(flat_params[0::2], flat_params[1::2]):
        # Weights/biases are tiny: keep them resident for the whole grid.
        in_specs.append(pl.BlockSpec(w2d.shape, lambda i: (0, 0)))
        in_specs.append(pl.BlockSpec(b2d.shape, lambda i: (0, 0)))
    out_specs = pl.BlockSpec((dout, tb), lambda i: (0, i))

    out_t = pl.pallas_call(
        kernel,
        out_shape=jax.ShapeDtypeStruct((dout, padded), out_dtype),
        grid=grid,
        in_specs=in_specs,
        out_specs=out_specs,
        compiler_params=pltpu.CompilerParams(
            dimension_semantics=("parallel",)),
    )(x_t, *flat_params)

    return jnp.transpose(out_t[:, :batch])


def init_mlp_params(key, input_dim, output_dim, num_hiddens, shrink):
    """Deterministic init matching nn.Linear shapes (weights stored [out, in])."""
    dims = []
    prev = input_dim
    for _ in range(num_hiddens):
        nxt = int(prev / shrink)
        dims.append((prev, nxt))
        prev = nxt
    dims.append((prev, output_dim))

    params = []
    for (d_in, d_out) in dims:
        key, kw, kb = jax.random.split(key, 3)
        bound = 1.0 / jnp.sqrt(d_in)
        w = jax.random.uniform(kw, (d_out, d_in), jnp.float32, -bound, bound)
        b = jax.random.uniform(kb, (d_out,), jnp.float32, -bound, bound)
        params.append((w, b))
    return params


def mlp_reference(x, params):
    n_layers = len(params)
    for i, (w, b) in enumerate(params):
        x = jnp.dot(x, w.T, preferred_element_type=jnp.float32) + b
        if i != n_layers - 1:
            x = jnp.maximum(x, 0.0)
    return x


if __name__ == "__main__":
    # Shapes consistent with the module: input_dim=32, output_dim=8,
    # num_hiddens=2, shrink=2  ->  32 -> 16 (ReLU) -> 8 (ReLU) -> 8
    batch = 8
    input_dim = 32
    output_dim = 8
    num_hiddens = 2
    shrink = 2

    key = jax.random.PRNGKey(0)
    key, kx = jax.random.split(key)
    x = jax.random.normal(kx, (batch, input_dim), jnp.float32)
    params = init_mlp_params(key, input_dim, output_dim, num_hiddens, shrink)

    # Small-batch path (single fused grid-less block).
    out = jax.block_until_ready(mlp_forward(x, params))
    ref = mlp_reference(x, params)
    assert out.shape == (batch, output_dim)
    assert jnp.allclose(out, ref, atol=1e-5, rtol=1e-5)

    # Batch-tiled lane-dense path: TB=512, grid=(2,), "parallel" batch axis.
    key, kx2 = jax.random.split(key)
    x_big = jax.random.normal(kx2, (1024, input_dim), jnp.float32)
    out_big = jax.block_until_ready(mlp_forward(x_big, params))
    ref_big = mlp_reference(x_big, params)
    assert out_big.shape == (1024, output_dim)
    assert jnp.allclose(out_big, ref_big, atol=1e-5, rtol=1e-5)

    # Non-divisible batch -> zero-padded tiled path (no single-block VMEM hazard).
    key, kx3 = jax.random.split(key)
    x_odd = jax.random.normal(kx3, (1000, input_dim), jnp.float32)
    out_odd = jax.block_until_ready(mlp_forward(x_odd, params))
    ref_odd = mlp_reference(x_odd, params)
    assert out_odd.shape == (1000, output_dim)
    assert jnp.allclose(out_odd, ref_odd, atol=1e-5, rtol=1e-5)

    print("KERNEL_OK")
</pallas_src>

<mosaic_0001>
module attributes {stable_mosaic.version = 11 : i64} {
  func.func @_fused_mlp_kernel(%arg0: memref<32x8xf32, #tpu.memory_space<vmem>>, %arg1: memref<16x32xf32, #tpu.memory_space<vmem>>, %arg2: memref<16x1xf32, #tpu.memory_space<vmem>>, %arg3: memref<8x16xf32, #tpu.memory_space<vmem>>, %arg4: memref<8x1xf32, #tpu.memory_space<vmem>>, %arg5: memref<8x8xf32, #tpu.memory_space<vmem>>, %arg6: memref<8x1xf32, #tpu.memory_space<vmem>>, %arg7: memref<8x8xf32, #tpu.memory_space<vmem>>) attributes {dimension_semantics = [], scalar_prefetch = 0 : i64, scratch_operands = 0 : i64, tpu.core_type = #tpu.core_type<tc>} {
    %c0 = arith.constant 0 : index
    %c0_0 = arith.constant 0 : index
    %0 = vector.load %arg0[%c0, %c0_0] : memref<32x8xf32, #tpu.memory_space<vmem>>, vector<32x8xf32>
    %c0_1 = arith.constant 0 : index
    %c0_2 = arith.constant 0 : index
    %1 = vector.load %arg1[%c0_1, %c0_2] : memref<16x32xf32, #tpu.memory_space<vmem>>, vector<16x32xf32>
    %c0_3 = arith.constant 0 : index
    %c0_4 = arith.constant 0 : index
    %2 = vector.load %arg2[%c0_3, %c0_4] : memref<16x1xf32, #tpu.memory_space<vmem>>, vector<16x1xf32>
    %cst = arith.constant dense<0.000000e+00> : vector<16x8xf32>
    %3 = tpu.matmul %1, %0, %cst {dimension_numbers = #tpu.dot_dimension_numbers<[1], [0], [0], [1], [0, 0, 1, 1], [], []>} : vector<16x32xf32>, vector<32x8xf32>, vector<16x8xf32> -> vector<16x8xf32>
    %4 = vector.broadcast %2 : vector<16x1xf32> to vector<16x8xf32>
    %5 = arith.addf %3, %4 : vector<16x8xf32>
    %cst_5 = arith.constant 0.000000e+00 : f32
    %6 = vector.broadcast %cst_5 : f32 to vector<16x8xf32>
    %7 = arith.maximumf %5, %6 : vector<16x8xf32>
    %c0_6 = arith.constant 0 : index
    %c0_7 = arith.constant 0 : index
    %8 = vector.load %arg3[%c0_6, %c0_7] : memref<8x16xf32, #tpu.memory_space<vmem>>, vector<8x16xf32>
    %c0_8 = arith.constant 0 : index
    %c0_9 = arith.constant 0 : index
    %9 = vector.load %arg4[%c0_8, %c0_9] : memref<8x1xf32, #tpu.memory_space<vmem>>, vector<8x1xf32>
    %cst_10 = arith.constant dense<0.000000e+00> : vector<8x8xf32>
    %10 = tpu.matmul %8, %7, %cst_10 {dimension_numbers = #tpu.dot_dimension_numbers<[1], [0], [0], [1], [0, 0, 1, 1], [], []>} : vector<8x16xf32>, vector<16x8xf32>, vector<8x8xf32> -> vector<8x8xf32>
    %11 = vector.broadcast %9 : vector<8x1xf32> to vector<8x8xf32>
    %12 = arith.addf %10, %11 : vector<8x8xf32>
    %cst_11 = arith.constant 0.000000e+00 : f32
    %13 = vector.broadcast %cst_11 : f32 to vector<8x8xf32>
    %14 = arith.maximumf %12, %13 : vector<8x8xf32>
    %c0_12 = arith.constant 0 : index
    %c0_13 = arith.constant 0 : index
    %15 = vector.load %arg5[%c0_12, %c0_13] : memref<8x8xf32, #tpu.memory_space<vmem>>, vector<8x8xf32>
    %c0_14 = arith.constant 0 : index
    %c0_15 = arith.constant 0 : index
    %16 = vector.load %arg6[%c0_14, %c0_15] : memref<8x1xf32, #tpu.memory_space<vmem>>, vector<8x1xf32>
    %cst_16 = arith.constant dense<0.000000e+00> : vector<8x8xf32>
    %17 = tpu.matmul %15, %14, %cst_16 {dimension_numbers = #tpu.dot_dimension_numbers<[1], [0], [0], [1], [0, 0, 1, 1], [], []>} : vector<8x8xf32>, vector<8x8xf32>, vector<8x8xf32> -> vector<8x8xf32>
    %18 = vector.broadcast %16 : vector<8x1xf32> to vector<8x8xf32>
    %19 = arith.addf %17, %18 : vector<8x8xf32>
    %c0_17 = arith.constant 0 : index
    %c0_18 = arith.constant 0 : index
    %20 = vector.load %arg7[%c0_17, %c0_18] : memref<8x8xf32, #tpu.memory_space<vmem>>, vector<8x8xf32>
    tpu.vector_store %arg7[%c0_17, %c0_18], %19 {strides = array<i32>} : memref<8x8xf32, #tpu.memory_space<vmem>>, vector<8x8xf32>,
    return
  }
}

</mosaic_0001>

<llo_original>
// kernel: tpu_custom_call.1
$region0: #{tpu_custom_call.1}
  #allocation0 [shape = 'u32[]', space=smem, size = 0x4, offset = 0x4, fixed_abs, tag = 'smem constant byte address 0x4 - core index']
  #allocation1 [shape = 'u32[144,128]{1,0:T(1,128)}', space=vmem, size = 0x12000, scoped, tag = 'internal scratch']
  %s0 = inlined_call_operand.vmem [shape: f32[32,8], index: 0, kind: input, shape index: {}]
  %s1 = inlined_call_operand.vmem [shape: f32[16,32], index: 1, kind: input, shape index: {}]
  %s2 = inlined_call_operand.vmem [shape: f32[16,1], index: 2, kind: input, shape index: {}]
  %s3 = inlined_call_operand.vmem [shape: f32[8,16], index: 3, kind: input, shape index: {}]
  %s4 = inlined_call_operand.vmem [shape: f32[8,1], index: 4, kind: input, shape index: {}]
  %s5 = inlined_call_operand.vmem [shape: f32[8,8], index: 5, kind: input, shape index: {}]
  %s6 = inlined_call_operand.vmem [shape: f32[8,1], index: 6, kind: input, shape index: {}]
  %s7 = inlined_call_operand.hbm [shape: f32[8,8], index: 7, kind: output, shape index: {}]
  %s8 = sld [smem:[#allocation0]]
  $region38: #{tpu_custom_call.1} parent=0
    _
  %s10 = ssub.s32 1, %s8
  %s11 = scalar_select 0, %s10, %s8
  $region1: #{tpu_custom_call.1} parent=0
    #allocation2 [shape = 'u8[4096]{0}', space=vmem, size = 0x1000, scoped, tag = 'output window, operand 0, single buffered']
    #allocation3 [shape = 's32[1]{0}', space=sflag, size = 0x4, scoped, tag = 'scoped memory for tpu_custom_call.1']
    %12 = vsyncpa [#allocation3], 0
    // Predicated region
    $region2: #{tpu_custom_call.1} parent=1 // pred_check
      _
    $region3: #{tpu_custom_call.1} parent=1 // pred_check_branch
      %14 = sbr.rel (0) target = $region5
    $region4: #{tpu_custom_call.1} parent=1 // pred_region
      _
    $region5: #{tpu_custom_call.1} parent=1 // pred_fallthru
      _
    // Predicated region
    $region6: #{tpu_custom_call.1} parent=1 // pred_check
      _
    $region7: #{tpu_custom_call.1} parent=1 // pred_check_branch
      %16 = sbr.rel (0) target = $region9
    $region8: #{tpu_custom_call.1} parent=1 // pred_region
      _
    $region9: #{tpu_custom_call.1} parent=1 // pred_fallthru
      _
    // Predicated region
    $region10: #{tpu_custom_call.1} parent=1 // pred_check
      _
    $region11: #{tpu_custom_call.1} parent=1 // pred_check_branch
      %18 = sbr.rel (0) target = $region13
    $region12: #{tpu_custom_call.1} parent=1 // pred_region
      _
    $region13: #{tpu_custom_call.1} parent=1 // pred_fallthru
      _
    // Predicated region
    $region14: #{tpu_custom_call.1} parent=1 // pred_check
      _
    $region15: #{tpu_custom_call.1} parent=1 // pred_check_branch
      %20 = sbr.rel (0) target = $region17
    $region16: #{tpu_custom_call.1} parent=1 // pred_region
      _
    $region17: #{tpu_custom_call.1} parent=1 // pred_fallthru
      _
    // Predicated region
    $region18: #{tpu_custom_call.1} parent=1 // pred_check
      _
    $region19: #{tpu_custom_call.1} parent=1 // pred_check_branch
      %22 = sbr.rel (0) target = $region21
    $region20: #{tpu_custom_call.1} parent=1 // pred_region
      _
    $region21: #{tpu_custom_call.1} parent=1 // pred_fallthru
      _
    // Predicated region
    $region22: #{tpu_custom_call.1} parent=1 // pred_check
      _
    $region23: #{tpu_custom_call.1} parent=1 // pred_check_branch
      %24 = sbr.rel (0) target = $region25
    $region24: #{tpu_custom_call.1} parent=1 // pred_region
      _
    $region25: #{tpu_custom_call.1} parent=1 // pred_fallthru
      _
    // Predicated region
    $region26: #{tpu_custom_call.1} parent=1 // pred_check
      _
    $region27: #{tpu_custom_call.1} parent=1 // pred_check_branch
      %26 = sbr.rel (0) target = $region29
    $region28: #{tpu_custom_call.1} parent=1 // pred_region
      _
    $region29: #{tpu_custom_call.1} parent=1 // pred_fallthru
      _
    %v27 = vld [vmem:[%s0] sm:$0xff]
    %v28 = vld [vmem:[%s0 + $0x8] sm:$0xff]
    %v29 = vld [vmem:[%s0 + $0x10] sm:$0xff]
    %v30 = vld [vmem:[%s0 + $0x18] sm:$0xff]
    %v31 = vld [vmem:[%s1] sm:$0xff]
    %v32 = vld [vmem:[%s1 + $0x8] sm:$0xff]
    %v33 = vld [vmem:[%s2] sm:$0xff]
    %v34 = vld [vmem:[%s2 + $0x8] sm:$0xff]
    %36 = vset.pattern.permute.xlu0 0
    %37 = vperm.xlu0 %36, %v33
    %v38 = vpop.permute.xlu0 %37
    %41 = vset.pattern.permute.xlu0 0
    %42 = vperm.xlu0 %41, %v34
    %v43 = vpop.permute.xlu0 %42
    %vm45 = vcmask 261120
    %v47 = vsel %vm45, %v31, 0
    %v50 = vsel %vm45, %v32, 0
    %52 = vmatprep.subr.mxu0 0.0
    %53 = vmatpush1.msra.mxu0 %v27
    %54 = vmatprep.subr.mxu0 0.0
    %55 = vmatpush1.msra.mxu0 %v28
    %56 = vmatprep.subr.mxu0 0.0
    %57 = vmatpush1.msra.mxu0 %v29
    %58 = vmatprep.subr.mxu0 0.0
    %59 = vmatpush1.msra.mxu0 %v30
    %60 = vmatprep.subr.mxu0 0.0
    %61 = vmatpush1.msra.mxu0 0.0
    %62 = vmatprep.subr.mxu0 0.0
    %63 = vmatpush1.msra.mxu0 0.0
    %64 = vmatprep.subr.mxu0 0.0
    %65 = vmatpush1.msra.mxu0 0.0
    %66 = vmatprep.subr.mxu0 0.0
    %67 = vmatpush1.msra.mxu0 0.0
    %68 = vmatprep.subr.mxu0 0.0
    %69 = vmatpush1.msra.mxu0 0.0
    %70 = vmatprep.subr.mxu0 0.0
    %71 = vmatpush1.msra.mxu0 0.0
    %72 = vmatprep.subr.mxu0 0.0
    %73 = vmatpush1.msra.mxu0 0.0
    %74 = vmatprep.subr.mxu0 0.0
    %75 = vmatpush1.msra.mxu0 0.0
    %76 = vmatprep.subr.mxu0 0.0
    %77 = vmatpush1.msra.mxu0 0.0
    %78 = vmatprep.subr.mxu0 0.0
    %79 = vmatpush1.msra.mxu0 0.0
    %80 = vmatprep.subr.mxu0 0.0
    %81 = vmatpush1.msra.mxu0 0.0
    %82 = vmatprep.subr.mxu0 0.0
    %83 = vmatpush1.msra.mxu0 0.0
    %84 = vmatprep.subr.mxu0 0.0
    %85 = vmatpush1.msra.mxu0 0.0
    %86 = vmatprep.subr.mxu0 0.0
    %87 = vmatpush1.msra.mxu0 0.0
    %88 = vmatprep.subr.mxu0 0.0
    %89 = vmatpush1.msra.mxu0 0.0
    %90 = vmatprep.subr.mxu0 0.0
    %91 = vmatpush1.msra.mxu0 0.0
    %92 = vmatprep.subr.mxu0 0.0
    %93 = vmatpush1.msra.mxu0 0.0
    %94 = vmatprep.subr.mxu0 0.0
    %95 = vmatpush1.msra.mxu0 0.0
    %96 = vmatprep.subr.mxu0 0.0
    %97 = vmatpush1.msra.mxu0 0.0
    %98 = vmatprep.subr.mxu0 0.0
    %99 = vmatpush1.msra.mxu0 0.0
    %100 = vmatprep.subr.mxu0 0.0
    %101 = vmatpush1.msra.mxu0 0.0
    %102 = vmatprep.subr.mxu0 0.0
    %103 = vmatpush1.msra.mxu0 0.0
    %104 = vmatprep.subr.mxu0 0.0
    %105 = vmatpush1.msra.mxu0 0.0
    %106 = vmatprep.subr.mxu0 0.0
    %107 = vmatpush1.msra.mxu0 0.0
    %108 = vmatprep.subr.mxu0 0.0
    %109 = vmatpush1.msra.mxu0 0.0
    %110 = vmatprep.subr.mxu0 0.0
    %111 = vmatpush1.msra.mxu0 0.0
    %112 = vmatprep.subr.mxu0 0.0
    %113 = vmatpush1.msra.mxu0 0.0
    %114 = vmatprep.subr.mxu0 0.0
    %115 = vmatpush1.msra.mxu0 0.0
    %116 = vmatprep.mubr.f32.mxu0 0.0
    %117 = vmatmul.mubr.f32.gmra.mrb[0].mxu0 %v47
    %v118 = vpop.f32.mrb[0].mxu0
    %v119 = vadd.f32 %v38, %v118
    %v120 = vpop.f32.mrb[0].mxu0
    %121 = vmatprep.mubr.f32.mxu0 0.0
    %122 = vmatmul.mubr.f32.gmra.mrb[0].mxu0 %v50
    %v123 = vpop.f32.mrb[0].mxu0
    %v124 = vadd.f32 %v43, %v123
    %v125 = vpop.f32.mrb[0].mxu0
    %126 = vdwg.mxu0
    %v127 = vmax.f32 %v119, 0.0
    %v128 = vmax.f32 %v124, 0.0
    %v129 = vld [vmem:[%s3] sm:$0xff]
    %v130 = vld [vmem:[%s4] sm:$0xff]
    %132 = vset.pattern.permute.xlu0 0
    %133 = vperm.xlu0 %132, %v130
    %v134 = vpop.permute.xlu0 %133
    %vm136 = vcmask 130048
    %v138 = vsel %vm136, %v129, 0
    %140 = vmatprep.subr.mxu0 0.0
    %141 = vmatpush1.msra.mxu0 %v127
    %142 = vmatprep.subr.mxu0 0.0
    %143 = vmatpush1.msra.mxu0 %v128
    %144 = vmatprep.subr.mxu0 0.0
    %145 = vmatpush1.msra.mxu0 0.0
    %146 = vmatprep.subr.mxu0 0.0
    %147 = vmatpush1.msra.mxu0 0.0
    %148 = vmatprep.subr.mxu0 0.0
    %149 = vmatpush1.msra.mxu0 0.0
    %150 = vmatprep.subr.mxu0 0.0
    %151 = vmatpush1.msra.mxu0 0.0
    %152 = vmatprep.subr.mxu0 0.0
    %153 = vmatpush1.msra.mxu0 0.0
    %154 = vmatprep.subr.mxu0 0.0
    %155 = vmatpush1.msra.mxu0 0.0
    %156 = vmatprep.subr.mxu0 0.0
    %157 = vmatpush1.msra.mxu0 0.0
    %158 = vmatprep.subr.mxu0 0.0
    %159 = vmatpush1.msra.mxu0 0.0
    %160 = vmatprep.subr.mxu0 0.0
    %161 = vmatpush1.msra.mxu0 0.0
    %162 = vmatprep.subr.mxu0 0.0
    %163 = vmatpush1.msra.mxu0 0.0
    %164 = vmatprep.subr.mxu0 0.0
    %165 = vmatpush1.msra.mxu0 0.0
    %166 = vmatprep.subr.mxu0 0.0
    %167 = vmatpush1.msra.mxu0 0.0
    %168 = vmatprep.subr.mxu0 0.0
    %169 = vmatpush1.msra.mxu0 0.0
    %170 = vmatprep.subr.mxu0 0.0
    %171 = vmatpush1.msra.mxu0 0.0
    %172 = vmatprep.subr.mxu0 0.0
    %173 = vmatpush1.msra.mxu0 0.0
    %174 = vmatprep.subr.mxu0 0.0
    %175 = vmatpush1.msra.mxu0 0.0
    %176 = vmatprep.subr.mxu0 0.0
    %177 = vmatpush1.msra.mxu0 0.0
    %178 = vmatprep.subr.mxu0 0.0
    %179 = vmatpush1.msra.mxu0 0.0
    %180 = vmatprep.subr.mxu0 0.0
    %181 = vmatpush1.msra.mxu0 0.0
    %182 = vmatprep.subr.mxu0 0.0
    %183 = vmatpush1.msra.mxu0 0.0
    %184 = vmatprep.subr.mxu0 0.0
    %185 = vmatpush1.msra.mxu0 0.0
    %186 = vmatprep.subr.mxu0 0.0
    %187 = vmatpush1.msra.mxu0 0.0
    %188 = vmatprep.subr.mxu0 0.0
    %189 = vmatpush1.msra.mxu0 0.0
    %190 = vmatprep.subr.mxu0 0.0
    %191 = vmatpush1.msra.mxu0 0.0
    %192 = vmatprep.subr.mxu0 0.0
    %193 = vmatpush1.msra.mxu0 0.0
    %194 = vmatprep.subr.mxu0 0.0
    %195 = vmatpush1.msra.mxu0 0.0
    %196 = vmatprep.subr.mxu0 0.0
    %197 = vmatpush1.msra.mxu0 0.0
    %198 = vmatprep.subr.mxu0 0.0
    %199 = vmatpush1.msra.mxu0 0.0
    %200 = vmatprep.subr.mxu0 0.0
    %201 = vmatpush1.msra.mxu0 0.0
    %202 = vmatprep.subr.mxu0 0.0
    %203 = vmatpush1.msra.mxu0 0.0
    %204 = vmatprep.mubr.f32.mxu0 0.0
    %205 = vmatmul.mubr.f32.gmra.mrb[0].mxu0 %v138
    %v206 = vpop.f32.mrb[0].mxu0
    %v207 = vadd.f32 %v134, %v206
    %v208 = vpop.f32.mrb[0].mxu0
    %209 = vdwg.mxu0
    %v210 = vmax.f32 %v207, 0.0
    %v211 = vld [vmem:[%s5] sm:$0xff]
    %v212 = vld [vmem:[%s6] sm:$0xff]
    %214 = vset.pattern.permute.xlu0 0
    %215 = vperm.xlu0 %214, %v212
    %v216 = vpop.permute.xlu0 %215
    %vm218 = vcmask 64512
    %v220 = vsel %vm218, %v211, 0
    %222 = vmatprep.subr.mxu0 0.0
    %223 = vmatpush1.msra.mxu0 %v210
    %224 = vmatprep.subr.mxu0 0.0
    %225 = vmatpush1.msra.mxu0 0.0
    %226 = vmatprep.subr.mxu0 0.0
    %227 = vmatpush1.msra.mxu0 0.0
    %228 = vmatprep.subr.mxu0 0.0
    %229 = vmatpush1.msra.mxu0 0.0
    %230 = vmatprep.subr.mxu0 0.0
    %231 = vmatpush1.msra.mxu0 0.0
    %232 = vmatprep.subr.mxu0 0.0
    %233 = vmatpush1.msra.mxu0 0.0
    %234 = vmatprep.subr.mxu0 0.0
    %235 = vmatpush1.msra.mxu0 0.0
    %236 = vmatprep.subr.mxu0 0.0
    %237 = vmatpush1.msra.mxu0 0.0
    %238 = vmatprep.subr.mxu0 0.0
    %239 = vmatpush1.msra.mxu0 0.0
    %240 = vmatprep.subr.mxu0 0.0
    %241 = vmatpush1.msra.mxu0 0.0
    %242 = vmatprep.subr.mxu0 0.0
    %243 = vmatpush1.msra.mxu0 0.0
    %244 = vmatprep.subr.mxu0 0.0
    %245 = vmatpush1.msra.mxu0 0.0
    %246 = vmatprep.subr.mxu0 0.0
    %247 = vmatpush1.msra.mxu0 0.0
    %248 = vmatprep.subr.mxu0 0.0
    %249 = vmatpush1.msra.mxu0 0.0
    %250 = vmatprep.subr.mxu0 0.0
    %251 = vmatpush1.msra.mxu0 0.0
    %252 = vmatprep.subr.mxu0 0.0
    %253 = vmatpush1.msra.mxu0 0.0
    %254 = vmatprep.subr.mxu0 0.0
    %255 = vmatpush1.msra.mxu0 0.0
    %256 = vmatprep.subr.mxu0 0.0
    %257 = vmatpush1.msra.mxu0 0.0
    %258 = vmatprep.subr.mxu0 0.0
    %259 = vmatpush1.msra.mxu0 0.0
    %260 = vmatprep.subr.mxu0 0.0
    %261 = vmatpush1.msra.mxu0 0.0
    %262 = vmatprep.subr.mxu0 0.0
    %263 = vmatpush1.msra.mxu0 0.0
    %264 = vmatprep.subr.mxu0 0.0
    %265 = vmatpush1.msra.mxu0 0.0
    %266 = vmatprep.subr.mxu0 0.0
    %267 = vmatpush1.msra.mxu0 0.0
    %268 = vmatprep.subr.mxu0 0.0
    %269 = vmatpush1.msra.mxu0 0.0
    %270 = vmatprep.subr.mxu0 0.0
    %271 = vmatpush1.msra.mxu0 0.0
    %272 = vmatprep.subr.mxu0 0.0
    %273 = vmatpush1.msra.mxu0 0.0
    %274 = vmatprep.subr.mxu0 0.0
    %275 = vmatpush1.msra.mxu0 0.0
    %276 = vmatprep.subr.mxu0 0.0
    %277 = vmatpush1.msra.mxu0 0.0
    %278 = vmatprep.subr.mxu0 0.0
    %279 = vmatpush1.msra.mxu0 0.0
    %280 = vmatprep.subr.mxu0 0.0
    %281 = vmatpush1.msra.mxu0 0.0
    %282 = vmatprep.subr.mxu0 0.0
    %283 = vmatpush1.msra.mxu0 0.0
    %284 = vmatprep.subr.mxu0 0.0
    %285 = vmatpush1.msra.mxu0 0.0
    %286 = vmatprep.mubr.f32.mxu0 0.0
    %287 = vmatmul.mubr.f32.gmra.mrb[0].mxu0 %v220
    %v288 = vpop.f32.mrb[0].mxu0
    %v289 = vadd.f32 %v216, %v288
    %v290 = vpop.f32.mrb[0].mxu0
    %291 = vdwg.mxu0
    %292 = vst.msk [vmem:[#allocation2] sm:$0xff] %vm218, %v289
    // Predicated region
    $region30: #{tpu_custom_call.1} parent=1 // pred_check
      _
    $region31: #{tpu_custom_call.1} parent=1 // pred_check_branch
      %294 = sbr.rel (0) target = $region33
    $region32: #{tpu_custom_call.1} parent=1 // pred_region
      %s296 = ssub.s32 128, 128
      %297 = vsyncadd [#allocation3], %s296
      %s299 = sshll.u32 [#allocation2], 4
      %s300 = int_to_ptr.vmem [resolvable:$true] %s299
      %302 = dma.vmem_to_hbm [thread:$0]  %s300, 128, %s7, [#allocation3]
    $region33: #{tpu_custom_call.1} parent=1 // pred_fallthru
      _
    // Predicated region
    $region34: #{tpu_custom_call.1} parent=1 // pred_check
      _
    $region35: #{tpu_custom_call.1} parent=1 // pred_check_branch
      %304 = sbr.rel (0) target = $region37
    $region36: #{tpu_custom_call.1} parent=1 // pred_region
      %305 = dma.done [#allocation3], 128
    $region37: #{tpu_custom_call.1} parent=1 // pred_fallthru
      _
    %306 = vsyncpa [#allocation3], 1

</llo_original>
